<compile_context>
chip_gen: v5e
topology: v5e:2x2
jax: 0.10.0
libtpu: 0.0.40
codegen_flags: <defaults>
</compile_context>

<pallas_src>
import math

import jax
import jax.numpy as jnp
from jax.experimental import pallas as pl
from jax.experimental.pallas import tpu as pltpu


_SQRT_2_OVER_PI = 0.7978845608028654


def _ffn_kernel(x_ref, w1_ref, b1_ref, w2_ref, b2_ref, o_ref, acc_ref):
    """One (M-tile, I-tile) step of y = GELU(x @ W1 + b1) @ W2 + b2."""
    k = pl.program_id(1)

    @pl.when(k == 0)
    def _():
        acc_ref[...] = jnp.zeros_like(acc_ref)

    # linear_1 tile: (tm, E) @ (E, tI) on the MXU (bf16 in, f32 accumulate) + bias.
    h = jnp.dot(x_ref[...], w1_ref[...],
                preferred_element_type=jnp.float32) + b1_ref[...]

    # GELU, tanh approximation, in f32 (tanh issues on the EUP slot).
    # TODO(synk): torch.nn.GELU() defaults to the exact erf formulation; the tanh
    # approximation differs by <~1e-3 and the reference in __main__ matches it.
    h = 0.5 * h * (1.0 + jnp.tanh(_SQRT_2_OVER_PI * (h + 0.044715 * (h * h * h))))

    # linear_2 tile: (tm, tI) @ (tI, E) on the MXU, accumulated over the I grid axis.
    acc_ref[...] += jnp.dot(h.astype(w2_ref.dtype), w2_ref[...],
                            preferred_element_type=jnp.float32)

    @pl.when(k == pl.num_programs(1) - 1)
    def _():
        # TODO(synk): nn.Dropout is identity in eval mode; training-mode dropout
        # (pltpu.prng_random_bits mask + 1/(1-p) rescale) is not implemented here.
        o_ref[...] = (acc_ref[...] + b2_ref[...]).astype(o_ref.dtype)


def _round_up(a, b):
    return (a + b - 1) // b * b


def _pad2d(a, rows, cols, dtype):
    a = a.astype(dtype)
    pr, pc = rows - a.shape[0], cols - a.shape[1]
    if pr or pc:
        a = jnp.pad(a, ((0, pr), (0, pc)))
    return a


def feed_forward(x, w1, b1, w2, b2, *, block_m=256, block_i=512):
    """x: (..., E); w1: (E, I); b1: (I,); w2: (I, E); b2: (E,). Returns x.shape."""
    E, I = w1.shape
    orig_shape = x.shape
    x2 = x.reshape(-1, E)                 # fold batch + seq into the M (sublane) axis
    M = x2.shape[0]

    # ---- tiling: lanes in multiples of 128, sublanes in multiples of 16 (bf16) ----
    sub = 16
    E_p = _round_up(E, 128)

    tm = max(sub, (block_m // sub) * sub)
    tm = min(tm, _round_up(M, sub))
    if M >= 2 * sub:
        # Cap at ceil(M/2) so large M always yields >= 2 M-tiles (both v7x TCs busy).
        tm = min(tm, _round_up((M + 1) // 2, sub))
    M_p = _round_up(M, tm)

    tI = min(max(128, (block_i // 128) * 128), _round_up(I, 128))
    I_p = _round_up(_round_up(I, 128), tI)

    # ---- zero-pad operands (bf16 for MXU operands, f32 for biases) ----
    x_p = _pad2d(x2, M_p, E_p, jnp.bfloat16)
    w1_p = _pad2d(w1, E_p, I_p, jnp.bfloat16)
    b1_p = _pad2d(b1.reshape(1, I), 1, I_p, jnp.float32)
    w2_p = _pad2d(w2, I_p, E_p, jnp.bfloat16)
    b2_p = _pad2d(b2.reshape(1, E), 1, E_p, jnp.float32)

    out_itemsize = jnp.dtype(x.dtype).itemsize

    # ---- VMEM budget (double-buffered tiles + accumulator + f32 intermediate) ----
    vmem_est = (2 * tm * E_p * 2            # x tiles (bf16)
                + 2 * E_p * tI * 2          # W1 tiles (bf16)
                + 2 * tI * E_p * 2          # W2 tiles (bf16)
                + 2 * tI * 4 + 2 * E_p * 4  # biases (f32)
                + 2 * tm * E_p * out_itemsize   # output tiles
                + tm * E_p * 4              # f32 accumulator scratch
                + tm * tI * 4)              # f32 GELU intermediate
    vmem_limit = int(min(max(2 * vmem_est, 32 * 1024 * 1024), 100 * 1024 * 1024))

    cost = pl.CostEstimate(
        flops=4 * M * E * I,
        transcendentals=M * I,
        bytes_accessed=(M_p * E_p + E_p * I_p + I_p * E_p) * 2
                       + (I_p + E_p) * 4 + M_p * E_p * out_itemsize,
    )

    out = pl.pallas_call(
        _ffn_kernel,
        out_shape=jax.ShapeDtypeStruct((M_p, E_p), x.dtype),
        grid_spec=pltpu.PrefetchScalarGridSpec(
            num_scalar_prefetch=0,
            grid=(M_p // tm, I_p // tI),
            in_specs=[
                pl.BlockSpec((tm, E_p), lambda i, k: (i, 0)),   # activations: M-tiled
                pl.BlockSpec((E_p, tI), lambda i, k: (0, k)),   # W1: I-tiled
                pl.BlockSpec((1, tI),   lambda i, k: (0, k)),   # b1: I-tiled
                pl.BlockSpec((tI, E_p), lambda i, k: (k, 0)),   # W2: I-tiled
                pl.BlockSpec((1, E_p),  lambda i, k: (0, 0)),   # b2: tiny, invariant
            ],
            out_specs=pl.BlockSpec((tm, E_p), lambda i, k: (i, 0)),
            scratch_shapes=[pltpu.VMEM((tm, E_p), jnp.float32)],
        ),
        compiler_params=pltpu.CompilerParams(
            dimension_semantics=("parallel", "arbitrary"),
            vmem_limit_bytes=vmem_limit,
        ),
        cost_estimate=cost,
    )(x_p, w1_p, b1_p, w2_p, b2_p)

    return out[:M, :E].reshape(orig_shape)


def _reference(x, w1, b1, w2, b2):
    # Mirrors the kernel's numerics: bf16 MXU inputs, f32 accumulation, tanh GELU,
    # eval-mode dropout (identity).
    h = jnp.dot(x.astype(jnp.bfloat16), w1.astype(jnp.bfloat16),
                preferred_element_type=jnp.float32) + b1
    h = jax.nn.gelu(h, approximate=True)
    y = jnp.dot(h.astype(jnp.bfloat16), w2.astype(jnp.bfloat16),
                preferred_element_type=jnp.float32) + b2
    return y.astype(x.dtype)


if __name__ == "__main__":
    # config: hidden_size=32, intermediate_size=128 (4x), batch=2, seq=8
    B, S, hidden, inter = 2, 8, 32, 128

    key0 = jax.random.PRNGKey(0)
    keys = jax.random.split(key0, 5)

    s1 = 1.0 / math.sqrt(hidden)   # nn.Linear(hidden, inter) init range
    s2 = 1.0 / math.sqrt(inter)    # nn.Linear(inter, hidden) init range
    w1 = jax.random.uniform(keys[0], (hidden, inter), jnp.float32, -s1, s1)
    b1 = jax.random.uniform(keys[1], (inter,), jnp.float32, -s1, s1)
    w2 = jax.random.uniform(keys[2], (inter, hidden), jnp.float32, -s2, s2)
    b2 = jax.random.uniform(keys[3], (hidden,), jnp.float32, -s2, s2)

    x = jax.random.normal(keys[4], (B, S, hidden), jnp.float32)

    out = jax.block_until_ready(feed_forward(x, w1, b1, w2, b2))
    ref = _reference(x, w1, b1, w2, b2)

    assert out.shape == (B, S, hidden)
    assert jnp.allclose(out, ref, atol=2e-2, rtol=2e-2), "mismatch vs reference"

    print("KERNEL_OK")
</pallas_src>

<mosaic_0001>
module attributes {stable_mosaic.version = 11 : i64} {
  func.func @_ffn_kernel(%arg0: i32, %arg1: i32, %arg2: memref<16x128xbf16, #tpu.memory_space<vmem>>, %arg3: memref<128x128xbf16, #tpu.memory_space<vmem>>, %arg4: memref<1x128xf32, #tpu.memory_space<vmem>>, %arg5: memref<128x128xbf16, #tpu.memory_space<vmem>>, %arg6: memref<1x128xf32, #tpu.memory_space<vmem>>, %arg7: memref<16x128xf32, #tpu.memory_space<vmem>>, %arg8: memref<16x128xf32, #tpu.memory_space<vmem>>) attributes {dimension_semantics = [#tpu.dimension_semantics<parallel>, #tpu.dimension_semantics<arbitrary>], iteration_bounds = array<i64: 1, 1>, scalar_prefetch = 0 : i64, scratch_operands = 1 : i64, tpu.core_type = #tpu.core_type<tc>, window_params = [{transform_indices = @transform_0, window_bounds = array<i64: 16, 128>}, {transform_indices = @transform_1, window_bounds = array<i64: 128, 128>}, {transform_indices = @transform_2, window_bounds = array<i64: 1, 128>}, {transform_indices = @transform_3, window_bounds = array<i64: 128, 128>}, {pipeline_mode = #tpu.pipeline_mode<synchronous>, transform_indices = @transform_4, window_bounds = array<i64: 1, 128>}, {transform_indices = @transform_5, window_bounds = array<i64: 16, 128>}]} {
    %c0_i32 = arith.constant 0 : i32
    %0 = arith.cmpi eq, %arg1, %c0_i32 : i32
    %1 = arith.extui %0 : i1 to i32
    %c0_i32_0 = arith.constant 0 : i32
    %2 = arith.cmpi ne, %1, %c0_i32_0 : i32
    scf.if %2 {
      %cst_19 = arith.constant 0.000000e+00 : f32
      %31 = vector.broadcast %cst_19 : f32 to vector<16x128xf32>
      %c0_20 = arith.constant 0 : index
      %c0_21 = arith.constant 0 : index
      %32 = vector.load %arg8[%c0_20, %c0_21] : memref<16x128xf32, #tpu.memory_space<vmem>>, vector<16x128xf32>
      tpu.vector_store %arg8[%c0_20, %c0_21], %31 {strides = array<i32>} : memref<16x128xf32, #tpu.memory_space<vmem>>, vector<16x128xf32>,
    } else {
    }
    %c0 = arith.constant 0 : index
    %c0_1 = arith.constant 0 : index
    %3 = vector.load %arg2[%c0, %c0_1] : memref<16x128xbf16, #tpu.memory_space<vmem>>, vector<16x128xbf16>
    %c0_2 = arith.constant 0 : index
    %c0_3 = arith.constant 0 : index
    %4 = vector.load %arg3[%c0_2, %c0_3] : memref<128x128xbf16, #tpu.memory_space<vmem>>, vector<128x128xbf16>
    %cst = arith.constant dense<0.000000e+00> : vector<16x128xf32>
    %5 = tpu.matmul %3, %4, %cst {dimension_numbers = #tpu.dot_dimension_numbers<[1], [0], [0], [1], [0, 0, 1, 1], [], []>} : vector<16x128xbf16>, vector<128x128xbf16>, vector<16x128xf32> -> vector<16x128xf32>
    %c0_4 = arith.constant 0 : index
    %c0_5 = arith.constant 0 : index
    %6 = vector.load %arg4[%c0_4, %c0_5] : memref<1x128xf32, #tpu.memory_space<vmem>>, vector<1x128xf32>
    %7 = vector.broadcast %6 : vector<1x128xf32> to vector<16x128xf32>
    %8 = arith.addf %5, %7 : vector<16x128xf32>
    %cst_6 = arith.constant 5.000000e-01 : f32
    %9 = vector.broadcast %cst_6 : f32 to vector<16x128xf32>
    %10 = arith.mulf %9, %8 : vector<16x128xf32>
    %11 = arith.mulf %8, %8 : vector<16x128xf32>
    %12 = arith.mulf %11, %8 : vector<16x128xf32>
    %cst_7 = arith.constant 4.471500e-02 : f32
    %13 = vector.broadcast %cst_7 : f32 to vector<16x128xf32>
    %14 = arith.mulf %13, %12 : vector<16x128xf32>
    %15 = arith.addf %8, %14 : vector<16x128xf32>
    %cst_8 = arith.constant 0.797884583 : f32
    %16 = vector.broadcast %cst_8 : f32 to vector<16x128xf32>
    %17 = arith.mulf %16, %15 : vector<16x128xf32>
    %18 = math.tanh %17 : vector<16x128xf32>
    %cst_9 = arith.constant 1.000000e+00 : f32
    %19 = vector.broadcast %cst_9 : f32 to vector<16x128xf32>
    %20 = arith.addf %19, %18 : vector<16x128xf32>
    %21 = arith.mulf %10, %20 : vector<16x128xf32>
    %c0_10 = arith.constant 0 : index
    %c0_11 = arith.constant 0 : index
    %22 = vector.load %arg8[%c0_10, %c0_11] : memref<16x128xf32, #tpu.memory_space<vmem>>, vector<16x128xf32>
    %23 = arith.truncf %21 : vector<16x128xf32> to vector<16x128xbf16>
    %c0_12 = arith.constant 0 : index
    %c0_13 = arith.constant 0 : index
    %24 = vector.load %arg5[%c0_12, %c0_13] : memref<128x128xbf16, #tpu.memory_space<vmem>>, vector<128x128xbf16>
    %cst_14 = arith.constant dense<0.000000e+00> : vector<16x128xf32>
    %25 = tpu.matmul %23, %24, %cst_14 {dimension_numbers = #tpu.dot_dimension_numbers<[1], [0], [0], [1], [0, 0, 1, 1], [], []>} : vector<16x128xbf16>, vector<128x128xbf16>, vector<16x128xf32> -> vector<16x128xf32>
    %26 = arith.addf %22, %25 : vector<16x128xf32>
    %c0_15 = arith.constant 0 : index
    %c0_16 = arith.constant 0 : index
    %27 = vector.load %arg8[%c0_15, %c0_16] : memref<16x128xf32, #tpu.memory_space<vmem>>, vector<16x128xf32>
    tpu.vector_store %arg8[%c0_15, %c0_16], %26 {strides = array<i32>} : memref<16x128xf32, #tpu.memory_space<vmem>>, vector<16x128xf32>,
    %c0_i32_17 = arith.constant 0 : i32
    %28 = arith.cmpi eq, %arg1, %c0_i32_17 : i32
    %29 = arith.extui %28 : i1 to i32
    %c0_i32_18 = arith.constant 0 : i32
    %30 = arith.cmpi ne, %29, %c0_i32_18 : i32
    scf.if %30 {
      %c0_19 = arith.constant 0 : index
      %c0_20 = arith.constant 0 : index
      %31 = vector.load %arg8[%c0_19, %c0_20] : memref<16x128xf32, #tpu.memory_space<vmem>>, vector<16x128xf32>
      %c0_21 = arith.constant 0 : index
      %c0_22 = arith.constant 0 : index
      %32 = vector.load %arg6[%c0_21, %c0_22] : memref<1x128xf32, #tpu.memory_space<vmem>>, vector<1x128xf32>
      %33 = vector.broadcast %32 : vector<1x128xf32> to vector<16x128xf32>
      %34 = arith.addf %31, %33 : vector<16x128xf32>
      %c0_23 = arith.constant 0 : index
      %c0_24 = arith.constant 0 : index
      %35 = vector.load %arg7[%c0_23, %c0_24] : memref<16x128xf32, #tpu.memory_space<vmem>>, vector<16x128xf32>
      tpu.vector_store %arg7[%c0_23, %c0_24], %34 {strides = array<i32>} : memref<16x128xf32, #tpu.memory_space<vmem>>, vector<16x128xf32>,
    } else {
    }
    return
  }
  func.func @transform_0(%arg0: i32, %arg1: i32) -> (i32, i32) {
    %c0_i32 = arith.constant 0 : i32
    %c0_i32_0 = arith.constant 0 : i32
    return %arg0, %c0_i32 : i32, i32
  }
  func.func @transform_1(%arg0: i32, %arg1: i32) -> (i32, i32) {
    %c0_i32 = arith.constant 0 : i32
    %c0_i32_0 = arith.constant 0 : i32
    return %c0_i32, %arg1 : i32, i32
  }
  func.func @transform_2(%arg0: i32, %arg1: i32) -> (i32, i32) {
    %c0_i32 = arith.constant 0 : i32
    %c0_i32_0 = arith.constant 0 : i32
    return %c0_i32, %arg1 : i32, i32
  }
  func.func @transform_3(%arg0: i32, %arg1: i32) -> (i32, i32) {
    %c0_i32 = arith.constant 0 : i32
    %c0_i32_0 = arith.constant 0 : i32
    return %arg1, %c0_i32 : i32, i32
  }
  func.func @transform_4(%arg0: i32, %arg1: i32) -> (i32, i32) {
    %c0_i32 = arith.constant 0 : i32
    %c0_i32_0 = arith.constant 0 : i32
    %c0_i32_1 = arith.constant 0 : i32
    return %c0_i32, %c0_i32_0 : i32, i32
  }
  func.func @transform_5(%arg0: i32, %arg1: i32) -> (i32, i32) {
    %c0_i32 = arith.constant 0 : i32
    %c0_i32_0 = arith.constant 0 : i32
    return %arg0, %c0_i32 : i32, i32
  }
}

</mosaic_0001>

<llo_original>
// kernel: tpu_custom_call.1
$region0: #{tpu_custom_call.1}
  #allocation0 [shape = 'u32[]', space=smem, size = 0x4, offset = 0x4, fixed_abs, tag = 'smem constant byte address 0x4 - core index']
  #allocation1 [shape = 'u32[72,128]{1,0:T(1,128)}', space=vmem, size = 0x9000, scoped, tag = 'internal scratch']
  #allocation2 [shape = 'f32[16,128]{1,0:T(8,128)}', space=vmem, size = 0x2000, scoped, tag = 'scratch operand']
  %s0 = inlined_call_operand.hbm [shape: bf16[16,128], index: 0, kind: input, shape index: {}]
  %s1 = inlined_call_operand.hbm [shape: bf16[128,128], index: 1, kind: input, shape index: {}]
  %s2 = inlined_call_operand.vmem [shape: f32[1,128], index: 2, kind: input, shape index: {}]
  %s3 = inlined_call_operand.hbm [shape: bf16[128,128], index: 3, kind: input, shape index: {}]
  %s4 = inlined_call_operand.vmem [shape: f32[1,128], index: 4, kind: input, shape index: {}]
  %s5 = inlined_call_operand.hbm [shape: f32[16,128], index: 5, kind: output, shape index: {}]
  %s6 = sld [smem:[#allocation0]]
  $region50: #{tpu_custom_call.1} parent=0
    _
  %s8 = ssub.s32 1, %s6
  %s9 = scalar_select 0, %s8, %s6
  $region1: #{tpu_custom_call.1} parent=0
    #allocation3 [shape = 'u8[4096]{0}', space=vmem, size = 0x1000, scoped, tag = 'input window, operand 0, single buffered']
    #allocation4 [shape = 's32[1]{0}', space=sflag, size = 0x4, scoped, tag = 'scoped memory for tpu_custom_call.1']
    #allocation5 [shape = 's32[1]{0}', space=sflag, size = 0x4, scoped, tag = 'scoped memory for tpu_custom_call.1']
    #allocation6 [shape = 'u8[32768]{0}', space=vmem, size = 0x8000, scoped, tag = 'input window, operand 1, single buffered']
    #allocation7 [shape = 's32[1]{0}', space=sflag, size = 0x4, scoped, tag = 'scoped memory for tpu_custom_call.1']
    #allocation8 [shape = 'u8[32768]{0}', space=vmem, size = 0x8000, scoped, tag = 'input window, operand 3, single buffered']
    #allocation9 [shape = 'u8[8192]{0}', space=vmem, size = 0x2000, scoped, tag = 'output window, operand 0, single buffered']
    %10 = vsyncpa [#allocation4], 0
    %11 = vsyncpa [#allocation7], 0
    %12 = vsyncpa [#allocation5], 0
    // Predicated region
    $region2: #{tpu_custom_call.1} parent=1 // pred_check
      _
    $region3: #{tpu_custom_call.1} parent=1 // pred_check_branch
      %14 = sbr.rel (0) target = $region5
    $region4: #{tpu_custom_call.1} parent=1 // pred_region
      %16 = vsyncadd [#allocation4], 0
      %s17 = sshll.u32 %s0, 4
      %s18 = int_to_ptr.hbm [resolvable:$true] %s17
      %s19 = sshll.u32 [#allocation3], 4
      %s20 = int_to_ptr.vmem [resolvable:$true] %s19
      %25 = dma.hbm_to_vmem [thread:$0]  %s18, 128, %s20, [#allocation4], 64, 64, 4
    $region5: #{tpu_custom_call.1} parent=1 // pred_fallthru
      _
    // Predicated region
    $region6: #{tpu_custom_call.1} parent=1 // pred_check
      _
    $region7: #{tpu_custom_call.1} parent=1 // pred_check_branch
      %27 = sbr.rel (0) target = $region9
    $region8: #{tpu_custom_call.1} parent=1 // pred_region
      %29 = vsyncadd [#allocation7], 0
      %s30 = sshll.u32 %s1, 4
      %s31 = int_to_ptr.hbm [resolvable:$true] %s30
      %s32 = sshll.u32 [#allocation6], 4
      %s33 = int_to_ptr.vmem [resolvable:$true] %s32
      %38 = dma.hbm_to_vmem [thread:$0]  %s31, 1024, %s33, [#allocation7], 64, 64, 4
    $region9: #{tpu_custom_call.1} parent=1 // pred_fallthru
      _
    // Predicated region
    $region10: #{tpu_custom_call.1} parent=1 // pred_check
      _
    $region11: #{tpu_custom_call.1} parent=1 // pred_check_branch
      %40 = sbr.rel (0) target = $region13
    $region12: #{tpu_custom_call.1} parent=1 // pred_region
      _
    $region13: #{tpu_custom_call.1} parent=1 // pred_fallthru
      _
    // Predicated region
    $region14: #{tpu_custom_call.1} parent=1 // pred_check
      _
    $region15: #{tpu_custom_call.1} parent=1 // pred_check_branch
      %42 = sbr.rel (0) target = $region17
    $region16: #{tpu_custom_call.1} parent=1 // pred_region
      %44 = vsyncadd [#allocation7], 0
      %s45 = sshll.u32 %s3, 4
      %s46 = int_to_ptr.hbm [resolvable:$true] %s45
      %s47 = sshll.u32 [#allocation8], 4
      %s48 = int_to_ptr.vmem [resolvable:$true] %s47
      %53 = dma.hbm_to_vmem [thread:$0]  %s46, 1024, %s48, [#allocation7], 64, 64, 4
    $region17: #{tpu_custom_call.1} parent=1 // pred_fallthru
      _
    // Predicated region
    $region18: #{tpu_custom_call.1} parent=1 // pred_check
      _
    $region19: #{tpu_custom_call.1} parent=1 // pred_check_branch
      %55 = sbr.rel (0) target = $region21
    $region20: #{tpu_custom_call.1} parent=1 // pred_region
      _
    $region21: #{tpu_custom_call.1} parent=1 // pred_fallthru
      _
    // Predicated region
    $region22: #{tpu_custom_call.1} parent=1 // pred_check
      _
    $region23: #{tpu_custom_call.1} parent=1 // pred_check_branch
      %57 = sbr.rel (0) target = $region25
    $region24: #{tpu_custom_call.1} parent=1 // pred_region
      %59 = dma.done [#allocation4], 128
    $region25: #{tpu_custom_call.1} parent=1 // pred_fallthru
      _
    // Predicated region
    $region26: #{tpu_custom_call.1} parent=1 // pred_check
      _
    $region27: #{tpu_custom_call.1} parent=1 // pred_check_branch
      %61 = sbr.rel (0) target = $region29
    $region28: #{tpu_custom_call.1} parent=1 // pred_region
      %63 = dma.done [#allocation7], 1024
    $region29: #{tpu_custom_call.1} parent=1 // pred_fallthru
      _
    // Predicated region
    $region30: #{tpu_custom_call.1} parent=1 // pred_check
      _
    $region31: #{tpu_custom_call.1} parent=1 // pred_check_branch
      %65 = sbr.rel (0) target = $region33
    $region32: #{tpu_custom_call.1} parent=1 // pred_region
      %67 = dma.done [#allocation7], 1024
    $region33: #{tpu_custom_call.1} parent=1 // pred_fallthru
      _
    %p68 = scmp.eq.s32.totalorder 0, 0
    // Predicated region
    $region34: #{tpu_custom_call.1} parent=1 // pred_check
      %p69 = pneg %p68
    $region35: #{tpu_custom_call.1} parent=1 // pred_check_branch
      %71 = sbr.rel (%p69) target = $region37
    $region36: #{tpu_custom_call.1} parent=1 // pred_region
      %72 = vst [vmem:[#allocation2] sm:$0xff] 0.0
      %73 = vst [vmem:[#allocation2 + $0x8] sm:$0xff] 0.0
    $region37: #{tpu_custom_call.1} parent=1 // pred_fallthru
      _
    %v74 = vld [vmem:[#allocation3] sm:$0xf]
    %v75 = vld [vmem:[#allocation3 + $0x4] sm:$0xf]
    %v76 = vld [vmem:[#allocation6] sm:$0xf]
    %v77 = vld [vmem:[#allocation6 + $0x4] sm:$0xf]
    %v78 = vld [vmem:[#allocation6 + $0x8] sm:$0xf]
    %v79 = vld [vmem:[#allocation6 + $0xc] sm:$0xf]
    %v80 = vld [vmem:[#allocation6 + $0x10] sm:$0xf]
    %v81 = vld [vmem:[#allocation6 + $0x14] sm:$0xf]
    %v82 = vld [vmem:[#allocation6 + $0x18] sm:$0xf]
    %v83 = vld [vmem:[#allocation6 + $0x1c] sm:$0xf]
    %v84 = vld [vmem:[#allocation6 + $0x20] sm:$0xf]
    %v85 = vld [vmem:[#allocation6 + $0x24] sm:$0xf]
    %v86 = vld [vmem:[#allocation6 + $0x28] sm:$0xf]
    %v87 = vld [vmem:[#allocation6 + $0x2c] sm:$0xf]
    %v88 = vld [vmem:[#allocation6 + $0x30] sm:$0xf]
    %v89 = vld [vmem:[#allocation6 + $0x34] sm:$0xf]
    %v90 = vld [vmem:[#allocation6 + $0x38] sm:$0xf]
    %v91 = vld [vmem:[#allocation6 + $0x3c] sm:$0xf]
    %v92 = vld [vmem:[%s2] sm:$0x1]
    %v94 = vperm.slane %v92, 0
    %v98 = vunpack.c.l.b16 %v74
    %v99 = vunpack.c.l.b16 %v75
    %v100 = vpack.c.b16 %v99, %v98
    %v118 = vunpack.c.l.b16 %v76
    %v119 = vunpack.c.l.b16 %v77
    %v120 = vunpack.c.l.b16 %v78
    %v121 = vunpack.c.l.b16 %v79
    %v122 = vunpack.c.l.b16 %v80
    %v123 = vunpack.c.l.b16 %v81
    %v124 = vunpack.c.l.b16 %v82
    %v125 = vunpack.c.l.b16 %v83
    %v126 = vunpack.c.l.b16 %v84
    %v127 = vunpack.c.l.b16 %v85
    %v128 = vunpack.c.l.b16 %v86
    %v129 = vunpack.c.l.b16 %v87
    %v130 = vunpack.c.l.b16 %v88
    %v131 = vunpack.c.l.b16 %v89
    %v132 = vunpack.c.l.b16 %v90
    %v133 = vunpack.c.l.b16 %v91
    %v134 = vpack.c.b16 %v119, %v118
    %v135 = vpack.c.b16 %v121, %v120
    %v136 = vpack.c.b16 %v123, %v122
    %v137 = vpack.c.b16 %v125, %v124
    %v138 = vpack.c.b16 %v127, %v126
    %v139 = vpack.c.b16 %v129, %v128
    %v140 = vpack.c.b16 %v131, %v130
    %v141 = vpack.c.b16 %v133, %v132
    %150 = vmatpush.bf16.msra.mxu0 %v141
    %151 = vmatpush.bf16.msra.mxu0 %v140
    %152 = vmatpush.bf16.msra.mxu0 %v139
    %153 = vmatpush.bf16.msra.mxu0 %v138
    %154 = vmatpush.bf16.msra.mxu0 %v137
    %155 = vmatpush.bf16.msra.mxu0 %v136
    %156 = vmatpush.bf16.msra.mxu0 %v135
    %157 = vmatpush.bf16.msra.mxu0 %v134
    %158 = vmatmul.bf16.gmra.mxu0 %v100
    %v159 = vpop.f32.mrf.mxu0
    %v160 = vadd.f32 %v94, %v159
    %v161 = vpop.f32.mrf.mxu0
    %v162 = vadd.f32 %v94, %v161
    %163 = vdwg.mxu0
    %v164 = vmul.f32 %v160, 0.5
    %v165 = vmul.f32 %v162, 0.5
    %v166 = vmul.f32 %v160, %v160
    %v167 = vmul.f32 %v162, %v162
    %v168 = vmul.f32 %v166, %v160
    %v169 = vmul.f32 %v167, %v162
    %v170 = vmul.f32 %v168, 0.044715
    %v171 = vmul.f32 %v169, 0.044715
    %v172 = vadd.f32 %v160, %v170
    %v173 = vadd.f32 %v162, %v171
    %v174 = vmul.f32 %v172, 0.7978846
    %v175 = vmul.f32 %v173, 0.7978846
    %v176 = vtanh.pop %v174
    %v177 = vtanh.pop %v175
    %v178 = vadd.f32 %v176, 1.0
    %v179 = vadd.f32 %v177, 1.0
    %v180 = vmul.f32 %v164, %v178
    %v181 = vmul.f32 %v165, %v179
    %v182 = vld [vmem:[#allocation2] sm:$0xff]
    %v183 = vld [vmem:[#allocation2 + $0x8] sm:$0xff]
    %v184 = vpack.c.bf16 %v181, %v180
    %v185 = vld [vmem:[#allocation8] sm:$0xf]
    %v186 = vld [vmem:[#allocation8 + $0x4] sm:$0xf]
    %v187 = vld [vmem:[#allocation8 + $0x8] sm:$0xf]
    %v188 = vld [vmem:[#allocation8 + $0xc] sm:$0xf]
    %v189 = vld [vmem:[#allocation8 + $0x10] sm:$0xf]
    %v190 = vld [vmem:[#allocation8 + $0x14] sm:$0xf]
    %v191 = vld [vmem:[#allocation8 + $0x18] sm:$0xf]
    %v192 = vld [vmem:[#allocation8 + $0x1c] sm:$0xf]
    %v193 = vld [vmem:[#allocation8 + $0x20] sm:$0xf]
    %v194 = vld [vmem:[#allocation8 + $0x24] sm:$0xf]
    %v195 = vld [vmem:[#allocation8 + $0x28] sm:$0xf]
    %v196 = vld [vmem:[#allocation8 + $0x2c] sm:$0xf]
    %v197 = vld [vmem:[#allocation8 + $0x30] sm:$0xf]
    %v198 = vld [vmem:[#allocation8 + $0x34] sm:$0xf]
    %v199 = vld [vmem:[#allocation8 + $0x38] sm:$0xf]
    %v200 = vld [vmem:[#allocation8 + $0x3c] sm:$0xf]
    %v217 = vunpack.c.l.b16 %v185
    %v218 = vunpack.c.l.b16 %v186
    %v219 = vunpack.c.l.b16 %v187
    %v220 = vunpack.c.l.b16 %v188
    %v221 = vunpack.c.l.b16 %v189
    %v222 = vunpack.c.l.b16 %v190
    %v223 = vunpack.c.l.b16 %v191
    %v224 = vunpack.c.l.b16 %v192
    %v225 = vunpack.c.l.b16 %v193
    %v226 = vunpack.c.l.b16 %v194
    %v227 = vunpack.c.l.b16 %v195
    %v228 = vunpack.c.l.b16 %v196
    %v229 = vunpack.c.l.b16 %v197
    %v230 = vunpack.c.l.b16 %v198
    %v231 = vunpack.c.l.b16 %v199
    %v232 = vunpack.c.l.b16 %v200
    %v233 = vpack.c.b16 %v218, %v217
    %v234 = vpack.c.b16 %v220, %v219
    %v235 = vpack.c.b16 %v222, %v221
    %v236 = vpack.c.b16 %v224, %v223
    %v237 = vpack.c.b16 %v226, %v225
    %v238 = vpack.c.b16 %v228, %v227
    %v239 = vpack.c.b16 %v230, %v229
    %v240 = vpack.c.b16 %v232, %v231
    %249 = vmatpush.bf16.msra.mxu0 %v240
    %250 = vmatpush.bf16.msra.mxu0 %v239
    %251 = vmatpush.bf16.msra.mxu0 %v238
    %252 = vmatpush.bf16.msra.mxu0 %v237
    %253 = vmatpush.bf16.msra.mxu0 %v236
    %254 = vmatpush.bf16.msra.mxu0 %v235
    %255 = vmatpush.bf16.msra.mxu0 %v234
    %256 = vmatpush.bf16.msra.mxu0 %v233
    %257 = vmatmul.bf16.gmra.mxu0 %v184
    %v258 = vpop.f32.mrf.mxu0
    %v259 = vadd.f32 0.0, %v258
    %v260 = vpop.f32.mrf.mxu0
    %v261 = vadd.f32 0.0, %v260
    %262 = vdwg.mxu0
    %v263 = vadd.f32 %v182, %v259
    %v264 = vadd.f32 %v183, %v261
    %265 = vst [vmem:[#allocation2] sm:$0xff] %v263
    %266 = vst [vmem:[#allocation2 + $0x8] sm:$0xff] %v264
    // Predicated region
    $region38: #{tpu_custom_call.1} parent=1 // pred_check
      %p267 = pneg %p68
    $region39: #{tpu_custom_call.1} parent=1 // pred_check_branch
      %269 = sbr.rel (%p267) target = $region41
    $region40: #{tpu_custom_call.1} parent=1 // pred_region
      %v270 = vld [vmem:[#allocation2] sm:$0xff]
      %v271 = vld [vmem:[#allocation2 + $0x8] sm:$0xff]
      %v272 = vld [vmem:[%s4] sm:$0x1]
      %v274 = vperm.slane %v272, 0
      %v276 = vadd.f32 %v270, %v274
      %v277 = vadd.f32 %v271, %v274
      %278 = vst [vmem:[#allocation9] sm:$0xff] %v276
      %279 = vst [vmem:[#allocation9 + $0x8] sm:$0xff] %v277
    $region41: #{tpu_custom_call.1} parent=1 // pred_fallthru
      _
    // Predicated region
    $region42: #{tpu_custom_call.1} parent=1 // pred_check
      _
    $region43: #{tpu_custom_call.1} parent=1 // pred_check_branch
      %281 = sbr.rel (0) target = $region45
    $region44: #{tpu_custom_call.1} parent=1 // pred_region
      %283 = vsyncadd [#allocation5], 0
      %s284 = sshll.u32 [#allocation9], 4
      %s285 = int_to_ptr.vmem [resolvable:$true] %s284
      %s286 = sshll.u32 %s5, 4
      %s287 = int_to_ptr.hbm [resolvable:$true] %s286
      %292 = dma.vmem_to_hbm [thread:$0]  %s285, 256, %s287, [#allocation5], 128, 128, 8
    $region45: #{tpu_custom_call.1} parent=1 // pred_fallthru
      _
    // Predicated region
    $region46: #{tpu_custom_call.1} parent=1 // pred_check
      _
    $region47: #{tpu_custom_call.1} parent=1 // pred_check_branch
      %294 = sbr.rel (0) target = $region49
    $region48: #{tpu_custom_call.1} parent=1 // pred_region
      %296 = dma.done [#allocation5], 256
    $region49: #{tpu_custom_call.1} parent=1 // pred_fallthru
      _
    %297 = vsyncpa [#allocation4], 1
    %298 = vsyncpa [#allocation7], 1
    %299 = vsyncpa [#allocation5], 1

</llo_original>
